<compile_context>
chip_gen: v7x
topology: tpu7x:2x2x1
jax: 0.10.0
libtpu: 0.0.40
codegen_flags: <defaults>
</compile_context>

<pallas_src>
import jax
import jax.numpy as jnp
from jax.experimental import pallas as pl
from jax.experimental.pallas import tpu as pltpu


def _round_up(x, m):
    return (x + m - 1) // m * m


def decoder_kernel(x_ref, w1_ref, b1_ref, w2_ref, b2_ref, w3_ref, b3_ref,
                   o_ref, h_scratch):
    # Grid = (batch tile i, output-column tile j); j is the innermost loop.
    j = pl.program_id(1)

    # Hidden activations depend only on the batch tile -> compute them once
    # per batch tile (when j == 0) and keep them (already cast to bf16 for the
    # MXU) in VMEM scratch for all output-column tiles of the streamed third
    # layer.
    @pl.when(j == 0)
    def _():
        h = jnp.dot(x_ref[...], w1_ref[...],
                    preferred_element_type=jnp.float32)
        h = jnp.maximum(h + b1_ref[...], 0.0)            # drop1: identity (eval)
        h = jnp.dot(h.astype(jnp.bfloat16), w2_ref[...],
                    preferred_element_type=jnp.float32)
        h = jnp.maximum(h + b2_ref[...], 0.0)            # drop2: identity (eval)
        h_scratch[...] = h.astype(jnp.bfloat16)

    out = jnp.dot(h_scratch[...], w3_ref[...],
                  preferred_element_type=jnp.float32)
    out = out + b3_ref[...]
    o_ref[...] = jax.nn.sigmoid(out).astype(o_ref.dtype)


def decoder_forward(x, params, *, batch_tile=256, out_tile=512):
    """x: [B, n_code] float32; params: dict of w1,b1,w2,b2,w3,b3 ([in,out])."""
    w1, b1 = params["w1"], params["b1"]
    w2, b2 = params["w2"], params["b2"]
    w3, b3 = params["w3"], params["b3"]

    B, n_code = x.shape
    n_hidden = w1.shape[1]
    n_output = w3.shape[1]

    # ---- lane/sublane-dense padded sizes --------------------------------
    Kc = _round_up(n_code, 128)
    H = _round_up(n_hidden, 128)
    TN = min(out_tile, _round_up(n_output, 128))
    N = _round_up(n_output, TN)
    TB = min(batch_tile, _round_up(B, 8))
    Bp = _round_up(B, TB)

    def pad2(a, r, c, dtype):
        buf = jnp.zeros((r, c), dtype)
        return buf.at[:a.shape[0], :a.shape[1]].set(a.astype(dtype))

    xp = pad2(x, Bp, Kc, jnp.bfloat16)
    w1p = pad2(w1, Kc, H, jnp.bfloat16)
    w2p = pad2(w2, H, H, jnp.bfloat16)
    w3p = pad2(w3, H, N, jnp.bfloat16)
    b1p = pad2(b1, 1, H, jnp.float32)
    b2p = pad2(b2, 1, H, jnp.float32)
    b3p = pad2(b3, 1, N, jnp.float32)

    grid = (Bp // TB, N // TN)

    # VMEM budget: resident weights + (double-buffered) streamed tiles.
    vmem_bytes = (
        2 * (Kc * H + H * H)        # w1, w2 (bf16, resident)
        + 2 * 2 * H * TN            # w3 column tile (bf16, double buffered)
        + 4 * (2 * H + 2 * TN)      # biases (f32, double counted generously)
        + 2 * 2 * TB * Kc           # x tile (bf16, double buffered)
        + 2 * 4 * TB * TN           # out tile (f32, double buffered)
        + 2 * TB * H                # hidden scratch (bf16)
    )
    vmem_limit = int(min(max(2 * vmem_bytes, 16 << 20), 48 << 20))

    out_padded = pl.pallas_call(
        decoder_kernel,
        out_shape=jax.ShapeDtypeStruct((Bp, N), jnp.float32),
        grid_spec=pltpu.PrefetchScalarGridSpec(
            num_scalar_prefetch=0,
            grid=grid,
            in_specs=[
                pl.BlockSpec((TB, Kc), lambda i, j: (i, 0)),  # x (batch tile)
                pl.BlockSpec((Kc, H), lambda i, j: (0, 0)),   # w1 (resident)
                pl.BlockSpec((1, H), lambda i, j: (0, 0)),    # b1 (resident)
                pl.BlockSpec((H, H), lambda i, j: (0, 0)),    # w2 (resident)
                pl.BlockSpec((1, H), lambda i, j: (0, 0)),    # b2 (resident)
                pl.BlockSpec((H, TN), lambda i, j: (0, j)),   # w3 column tile
                pl.BlockSpec((1, TN), lambda i, j: (0, j)),   # b3 column tile
            ],
            out_specs=pl.BlockSpec((TB, TN), lambda i, j: (i, j)),
            scratch_shapes=[pltpu.VMEM((TB, H), jnp.bfloat16)],
        ),
        compiler_params=pltpu.CompilerParams(
            dimension_semantics=("parallel", "arbitrary"),
            vmem_limit_bytes=vmem_limit,
        ),
    )(xp, w1p, b1p, w2p, b2p, w3p, b3p)

    return out_padded[:B, :n_output]


def init_params(key, n_code, n_hidden, n_output):
    """Deterministic init matching nn.Linear's U(-1/sqrt(fan_in), 1/sqrt(fan_in)).
    Weights stored as [in, out] (transpose of the torch layout)."""
    ks = jax.random.split(key, 6)

    def lin(kw, kb, fan_in, fan_out):
        bound = 1.0 / jnp.sqrt(float(fan_in))
        w = jax.random.uniform(kw, (fan_in, fan_out), jnp.float32, -bound, bound)
        b = jax.random.uniform(kb, (1, fan_out), jnp.float32, -bound, bound)
        return w, b

    w1, b1 = lin(ks[0], ks[1], n_code, n_hidden)
    w2, b2 = lin(ks[2], ks[3], n_hidden, n_hidden)
    w3, b3 = lin(ks[4], ks[5], n_hidden, n_output)
    return {"w1": w1, "b1": b1, "w2": w2, "b2": b2, "w3": w3, "b3": b3}


def decoder_ref(x, params):
    """Pure-JAX reference with the same bf16-weight / f32-accumulate recipe."""
    bf, f32 = jnp.bfloat16, jnp.float32
    w1 = params["w1"].astype(bf)
    w2 = params["w2"].astype(bf)
    w3 = params["w3"].astype(bf)
    b1 = params["b1"].astype(f32)
    b2 = params["b2"].astype(f32)
    b3 = params["b3"].astype(f32)

    h = jnp.dot(x.astype(bf), w1, preferred_element_type=f32) + b1
    h = jnp.maximum(h, 0.0)
    h = jnp.dot(h.astype(bf), w2, preferred_element_type=f32) + b2
    h = jnp.maximum(h, 0.0)
    out = jnp.dot(h.astype(bf), w3, preferred_element_type=f32) + b3
    return jax.nn.sigmoid(out)


if __name__ == "__main__":
    key = jax.random.PRNGKey(0)
    k_x, k_p = jax.random.split(key)

    B, n_code, n_hidden, n_output = 8, 16, 32, 64
    x = jax.random.normal(k_x, (B, n_code), jnp.float32)  # latent code input
    params = init_params(k_p, n_code, n_hidden, n_output)

    out = decoder_forward(x, params)
    out = jax.block_until_ready(out)

    ref = decoder_ref(x, params)
    assert out.shape == (B, n_output)
    assert jnp.allclose(out, ref, atol=2e-3, rtol=2e-3)

    print("KERNEL_OK")
</pallas_src>

<mosaic_0001>
module attributes {stable_mosaic.version = 11 : i64} {
  func.func @decoder_kernel(%arg0: i32, %arg1: i32, %arg2: memref<8x128xbf16, #tpu.memory_space<vmem>>, %arg3: memref<128x128xbf16, #tpu.memory_space<vmem>>, %arg4: memref<1x128xf32, #tpu.memory_space<vmem>>, %arg5: memref<128x128xbf16, #tpu.memory_space<vmem>>, %arg6: memref<1x128xf32, #tpu.memory_space<vmem>>, %arg7: memref<128x128xbf16, #tpu.memory_space<vmem>>, %arg8: memref<1x128xf32, #tpu.memory_space<vmem>>, %arg9: memref<8x128xf32, #tpu.memory_space<vmem>>, %arg10: memref<8x128xbf16, #tpu.memory_space<vmem>>) attributes {dimension_semantics = [#tpu.dimension_semantics<parallel>, #tpu.dimension_semantics<arbitrary>], iteration_bounds = array<i64: 1, 1>, scalar_prefetch = 0 : i64, scratch_operands = 1 : i64, tpu.core_type = #tpu.core_type<tc>, window_params = [{transform_indices = @transform_0, window_bounds = array<i64: 8, 128>}, {pipeline_mode = #tpu.pipeline_mode<synchronous>, transform_indices = @transform_1, window_bounds = array<i64: 128, 128>}, {pipeline_mode = #tpu.pipeline_mode<synchronous>, transform_indices = @transform_2, window_bounds = array<i64: 1, 128>}, {pipeline_mode = #tpu.pipeline_mode<synchronous>, transform_indices = @transform_3, window_bounds = array<i64: 128, 128>}, {pipeline_mode = #tpu.pipeline_mode<synchronous>, transform_indices = @transform_4, window_bounds = array<i64: 1, 128>}, {transform_indices = @transform_5, window_bounds = array<i64: 128, 128>}, {transform_indices = @transform_6, window_bounds = array<i64: 1, 128>}, {transform_indices = @transform_7, window_bounds = array<i64: 8, 128>}]} {
    %c0_i32 = arith.constant 0 : i32
    %0 = arith.cmpi eq, %arg1, %c0_i32 : i32
    %1 = arith.extui %0 : i1 to i32
    %c0_i32_0 = arith.constant 0 : i32
    %2 = arith.cmpi ne, %1, %c0_i32_0 : i32
    scf.if %2 {
      %c0_9 = arith.constant 0 : index
      %c0_10 = arith.constant 0 : index
      %15 = vector.load %arg2[%c0_9, %c0_10] : memref<8x128xbf16, #tpu.memory_space<vmem>>, vector<8x128xbf16>
      %c0_11 = arith.constant 0 : index
      %c0_12 = arith.constant 0 : index
      %16 = vector.load %arg3[%c0_11, %c0_12] : memref<128x128xbf16, #tpu.memory_space<vmem>>, vector<128x128xbf16>
      %cst_13 = arith.constant dense<0.000000e+00> : vector<8x128xf32>
      %17 = tpu.matmul %15, %16, %cst_13 {dimension_numbers = #tpu.dot_dimension_numbers<[1], [0], [0], [1], [0, 0, 1, 1], [], []>} : vector<8x128xbf16>, vector<128x128xbf16>, vector<8x128xf32> -> vector<8x128xf32>
      %c0_14 = arith.constant 0 : index
      %c0_15 = arith.constant 0 : index
      %18 = vector.load %arg4[%c0_14, %c0_15] : memref<1x128xf32, #tpu.memory_space<vmem>>, vector<1x128xf32>
      %19 = vector.broadcast %18 : vector<1x128xf32> to vector<8x128xf32>
      %20 = arith.addf %17, %19 : vector<8x128xf32>
      %cst_16 = arith.constant 0.000000e+00 : f32
      %21 = vector.broadcast %cst_16 : f32 to vector<8x128xf32>
      %22 = arith.maximumf %20, %21 : vector<8x128xf32>
      %23 = arith.truncf %22 : vector<8x128xf32> to vector<8x128xbf16>
      %c0_17 = arith.constant 0 : index
      %c0_18 = arith.constant 0 : index
      %24 = vector.load %arg5[%c0_17, %c0_18] : memref<128x128xbf16, #tpu.memory_space<vmem>>, vector<128x128xbf16>
      %cst_19 = arith.constant dense<0.000000e+00> : vector<8x128xf32>
      %25 = tpu.matmul %23, %24, %cst_19 {dimension_numbers = #tpu.dot_dimension_numbers<[1], [0], [0], [1], [0, 0, 1, 1], [], []>} : vector<8x128xbf16>, vector<128x128xbf16>, vector<8x128xf32> -> vector<8x128xf32>
      %c0_20 = arith.constant 0 : index
      %c0_21 = arith.constant 0 : index
      %26 = vector.load %arg6[%c0_20, %c0_21] : memref<1x128xf32, #tpu.memory_space<vmem>>, vector<1x128xf32>
      %27 = vector.broadcast %26 : vector<1x128xf32> to vector<8x128xf32>
      %28 = arith.addf %25, %27 : vector<8x128xf32>
      %cst_22 = arith.constant 0.000000e+00 : f32
      %29 = vector.broadcast %cst_22 : f32 to vector<8x128xf32>
      %30 = arith.maximumf %28, %29 : vector<8x128xf32>
      %31 = arith.truncf %30 : vector<8x128xf32> to vector<8x128xbf16>
      %c0_23 = arith.constant 0 : index
      %c0_24 = arith.constant 0 : index
      %32 = vector.load %arg10[%c0_23, %c0_24] : memref<8x128xbf16, #tpu.memory_space<vmem>>, vector<8x128xbf16>
      tpu.vector_store %arg10[%c0_23, %c0_24], %31 {strides = array<i32>} : memref<8x128xbf16, #tpu.memory_space<vmem>>, vector<8x128xbf16>,
    } else {
    }
    %c0 = arith.constant 0 : index
    %c0_1 = arith.constant 0 : index
    %3 = vector.load %arg10[%c0, %c0_1] : memref<8x128xbf16, #tpu.memory_space<vmem>>, vector<8x128xbf16>
    %c0_2 = arith.constant 0 : index
    %c0_3 = arith.constant 0 : index
    %4 = vector.load %arg7[%c0_2, %c0_3] : memref<128x128xbf16, #tpu.memory_space<vmem>>, vector<128x128xbf16>
    %cst = arith.constant dense<0.000000e+00> : vector<8x128xf32>
    %5 = tpu.matmul %3, %4, %cst {dimension_numbers = #tpu.dot_dimension_numbers<[1], [0], [0], [1], [0, 0, 1, 1], [], []>} : vector<8x128xbf16>, vector<128x128xbf16>, vector<8x128xf32> -> vector<8x128xf32>
    %c0_4 = arith.constant 0 : index
    %c0_5 = arith.constant 0 : index
    %6 = vector.load %arg8[%c0_4, %c0_5] : memref<1x128xf32, #tpu.memory_space<vmem>>, vector<1x128xf32>
    %7 = vector.broadcast %6 : vector<1x128xf32> to vector<8x128xf32>
    %8 = arith.addf %5, %7 : vector<8x128xf32>
    %9 = arith.negf %8 : vector<8x128xf32>
    %10 = math.exp %9 : vector<8x128xf32>
    %cst_6 = arith.constant 1.000000e+00 : f32
    %11 = vector.broadcast %cst_6 : f32 to vector<8x128xf32>
    %12 = arith.addf %11, %10 : vector<8x128xf32>
    %13 = arith.divf %11, %12 : vector<8x128xf32>
    %c0_7 = arith.constant 0 : index
    %c0_8 = arith.constant 0 : index
    %14 = vector.load %arg9[%c0_7, %c0_8] : memref<8x128xf32, #tpu.memory_space<vmem>>, vector<8x128xf32>
    tpu.vector_store %arg9[%c0_7, %c0_8], %13 {strides = array<i32>} : memref<8x128xf32, #tpu.memory_space<vmem>>, vector<8x128xf32>,
    return
  }
  func.func @transform_0(%arg0: i32, %arg1: i32) -> (i32, i32) {
    %c0_i32 = arith.constant 0 : i32
    %c0_i32_0 = arith.constant 0 : i32
    return %arg0, %c0_i32 : i32, i32
  }
  func.func @transform_1(%arg0: i32, %arg1: i32) -> (i32, i32) {
    %c0_i32 = arith.constant 0 : i32
    %c0_i32_0 = arith.constant 0 : i32
    %c0_i32_1 = arith.constant 0 : i32
    return %c0_i32, %c0_i32_0 : i32, i32
  }
  func.func @transform_2(%arg0: i32, %arg1: i32) -> (i32, i32) {
    %c0_i32 = arith.constant 0 : i32
    %c0_i32_0 = arith.constant 0 : i32
    %c0_i32_1 = arith.constant 0 : i32
    return %c0_i32, %c0_i32_0 : i32, i32
  }
  func.func @transform_3(%arg0: i32, %arg1: i32) -> (i32, i32) {
    %c0_i32 = arith.constant 0 : i32
    %c0_i32_0 = arith.constant 0 : i32
    %c0_i32_1 = arith.constant 0 : i32
    return %c0_i32, %c0_i32_0 : i32, i32
  }
  func.func @transform_4(%arg0: i32, %arg1: i32) -> (i32, i32) {
    %c0_i32 = arith.constant 0 : i32
    %c0_i32_0 = arith.constant 0 : i32
    %c0_i32_1 = arith.constant 0 : i32
    return %c0_i32, %c0_i32_0 : i32, i32
  }
  func.func @transform_5(%arg0: i32, %arg1: i32) -> (i32, i32) {
    %c0_i32 = arith.constant 0 : i32
    %c0_i32_0 = arith.constant 0 : i32
    return %c0_i32, %arg1 : i32, i32
  }
  func.func @transform_6(%arg0: i32, %arg1: i32) -> (i32, i32) {
    %c0_i32 = arith.constant 0 : i32
    %c0_i32_0 = arith.constant 0 : i32
    return %c0_i32, %arg1 : i32, i32
  }
  func.func @transform_7(%arg0: i32, %arg1: i32) -> (i32, i32) {
    %c0_i32 = arith.constant 0 : i32
    return %arg0, %arg1 : i32, i32
  }
}

</mosaic_0001>

<llo_original>
// kernel: tpu_custom_call.1
$region0: #{tpu_custom_call.1}
  #allocation0 [shape = 'u32[]', space=smem, size = 0x4, offset = 0x4, fixed_abs, tag = 'smem constant byte address 0x4 - core index']
  #allocation1 [shape = 'u32[144,128]{1,0:T(1,128)}', space=vmem, size = 0x12000, scoped, tag = 'internal scratch']
  #allocation2 [shape = 'bf16[8,128]{1,0:T(8,128)(2,1)}', space=vmem, size = 0x800, scoped, tag = 'scratch operand']
  %s0 = inlined_call_operand.hbm [shape: bf16[8,128], index: 0, kind: input, shape index: {}]
  %s1 = inlined_call_operand.hbm [shape: bf16[128,128], index: 1, kind: input, shape index: {}]
  %s2 = inlined_call_operand.vmem [shape: f32[1,128], index: 2, kind: input, shape index: {}]
  %s3 = inlined_call_operand.hbm [shape: bf16[128,128], index: 3, kind: input, shape index: {}]
  %s4 = inlined_call_operand.vmem [shape: f32[1,128], index: 4, kind: input, shape index: {}]
  %s5 = inlined_call_operand.hbm [shape: bf16[128,128], index: 5, kind: input, shape index: {}]
  %s6 = inlined_call_operand.vmem [shape: f32[1,128], index: 6, kind: input, shape index: {}]
  %s7 = inlined_call_operand.hbm [shape: f32[8,128], index: 7, kind: output, shape index: {}]
  %s8 = sld [smem:[#allocation0]]
  $region58: #{tpu_custom_call.1} parent=0
    _
  %s10 = ssub.s32 1, %s8
  %s11 = scalar_select 0, %s10, %s8
  $region1: #{tpu_custom_call.1} parent=0
    #allocation3 [shape = 'u8[2048]{0}', space=vmem, size = 0x800, scoped, tag = 'input window, operand 0, single buffered']
    #allocation4 [shape = 's32[1]{0}', space=sflag, size = 0x4, scoped, tag = 'scoped memory for tpu_custom_call.1']
    #allocation5 [shape = 's32[1]{0}', space=sflag, size = 0x4, scoped, tag = 'scoped memory for tpu_custom_call.1']
    #allocation6 [shape = 'u8[32768]{0}', space=vmem, size = 0x8000, scoped, tag = 'input window, operand 1, single buffered']
    #allocation7 [shape = 's32[1]{0}', space=sflag, size = 0x4, scoped, tag = 'scoped memory for tpu_custom_call.1']
    #allocation8 [shape = 'u8[32768]{0}', space=vmem, size = 0x8000, scoped, tag = 'input window, operand 3, single buffered']
    #allocation9 [shape = 'u8[32768]{0}', space=vmem, size = 0x8000, scoped, tag = 'input window, operand 5, single buffered']
    #allocation10 [shape = 's32[1]{0}', space=sflag, size = 0x4, scoped, tag = 'scoped memory for tpu_custom_call.1']
    #allocation11 [shape = 'u8[4096]{0}', space=vmem, size = 0x1000, scoped, tag = 'output window, operand 0, single buffered']
    %12 = vsyncpa [#allocation4], 0
    %13 = vsyncpa [#allocation7], 0
    %14 = vsyncpa [#allocation10], 0
    %15 = vsyncpa [#allocation5], 0
    // Predicated region
    $region2: #{tpu_custom_call.1} parent=1 // pred_check
      _
    $region3: #{tpu_custom_call.1} parent=1 // pred_check_branch
      %17 = sbr.rel (0) target = $region5
    $region4: #{tpu_custom_call.1} parent=1 // pred_region
      %s19 = ssub.s32 64, 64
      %20 = vsyncadd [#allocation4], %s19
      %s22 = sshll.u32 [#allocation3], 4
      %s23 = int_to_ptr.vmem [resolvable:$true] %s22
      %25 = dma.hbm_to_vmem [thread:$0]  %s0, 64, %s23, [#allocation4]
    $region5: #{tpu_custom_call.1} parent=1 // pred_fallthru
      _
    // Predicated region
    $region6: #{tpu_custom_call.1} parent=1 // pred_check
      _
    $region7: #{tpu_custom_call.1} parent=1 // pred_check_branch
      %27 = sbr.rel (0) target = $region9
    $region8: #{tpu_custom_call.1} parent=1 // pred_region
      %s29 = ssub.s32 1024, 1024
      %30 = vsyncadd [#allocation7], %s29
      %s31 = sshll.u32 [#allocation6], 4
      %s32 = int_to_ptr.vmem [resolvable:$true] %s31
      %37 = dma.hbm_to_vmem [thread:$0]  %s1, 1024, %s32, [#allocation7], 64, 64, 4
    $region9: #{tpu_custom_call.1} parent=1 // pred_fallthru
      _
    // Predicated region
    $region10: #{tpu_custom_call.1} parent=1 // pred_check
      _
    $region11: #{tpu_custom_call.1} parent=1 // pred_check_branch
      %39 = sbr.rel (0) target = $region13
    $region12: #{tpu_custom_call.1} parent=1 // pred_region
      _
    $region13: #{tpu_custom_call.1} parent=1 // pred_fallthru
      _
    // Predicated region
    $region14: #{tpu_custom_call.1} parent=1 // pred_check
      _
    $region15: #{tpu_custom_call.1} parent=1 // pred_check_branch
      %41 = sbr.rel (0) target = $region17
    $region16: #{tpu_custom_call.1} parent=1 // pred_region
      %s43 = ssub.s32 1024, 1024
      %44 = vsyncadd [#allocation7], %s43
      %s45 = sshll.u32 [#allocation8], 4
      %s46 = int_to_ptr.vmem [resolvable:$true] %s45
      %51 = dma.hbm_to_vmem [thread:$0]  %s3, 1024, %s46, [#allocation7], 64, 64, 4
    $region17: #{tpu_custom_call.1} parent=1 // pred_fallthru
      _
    // Predicated region
    $region18: #{tpu_custom_call.1} parent=1 // pred_check
      _
    $region19: #{tpu_custom_call.1} parent=1 // pred_check_branch
      %53 = sbr.rel (0) target = $region21
    $region20: #{tpu_custom_call.1} parent=1 // pred_region
      _
    $region21: #{tpu_custom_call.1} parent=1 // pred_fallthru
      _
    // Predicated region
    $region22: #{tpu_custom_call.1} parent=1 // pred_check
      _
    $region23: #{tpu_custom_call.1} parent=1 // pred_check_branch
      %55 = sbr.rel (0) target = $region25
    $region24: #{tpu_custom_call.1} parent=1 // pred_region
      %s57 = ssub.s32 1024, 1024
      %58 = vsyncadd [#allocation10], %s57
      %s59 = sshll.u32 [#allocation9], 4
      %s60 = int_to_ptr.vmem [resolvable:$true] %s59
      %65 = dma.hbm_to_vmem [thread:$0]  %s5, 1024, %s60, [#allocation10], 64, 64, 4
    $region25: #{tpu_custom_call.1} parent=1 // pred_fallthru
      _
    // Predicated region
    $region26: #{tpu_custom_call.1} parent=1 // pred_check
      _
    $region27: #{tpu_custom_call.1} parent=1 // pred_check_branch
      %67 = sbr.rel (0) target = $region29
    $region28: #{tpu_custom_call.1} parent=1 // pred_region
      _
    $region29: #{tpu_custom_call.1} parent=1 // pred_fallthru
      _
    // Predicated region
    $region30: #{tpu_custom_call.1} parent=1 // pred_check
      _
    $region31: #{tpu_custom_call.1} parent=1 // pred_check_branch
      %69 = sbr.rel (0) target = $region33
    $region32: #{tpu_custom_call.1} parent=1 // pred_region
      %70 = dma.done [#allocation4], 64
    $region33: #{tpu_custom_call.1} parent=1 // pred_fallthru
      _
    // Predicated region
    $region34: #{tpu_custom_call.1} parent=1 // pred_check
      _
    $region35: #{tpu_custom_call.1} parent=1 // pred_check_branch
      %72 = sbr.rel (0) target = $region37
    $region36: #{tpu_custom_call.1} parent=1 // pred_region
      %73 = dma.done [#allocation7], 1024
    $region37: #{tpu_custom_call.1} parent=1 // pred_fallthru
      _
    // Predicated region
    $region38: #{tpu_custom_call.1} parent=1 // pred_check
      _
    $region39: #{tpu_custom_call.1} parent=1 // pred_check_branch
      %75 = sbr.rel (0) target = $region41
    $region40: #{tpu_custom_call.1} parent=1 // pred_region
      %76 = dma.done [#allocation7], 1024
    $region41: #{tpu_custom_call.1} parent=1 // pred_fallthru
      _
    // Predicated region
    $region42: #{tpu_custom_call.1} parent=1 // pred_check
      _
    $region43: #{tpu_custom_call.1} parent=1 // pred_check_branch
      %78 = sbr.rel (0) target = $region45
    $region44: #{tpu_custom_call.1} parent=1 // pred_region
      %79 = dma.done [#allocation10], 1024
    $region45: #{tpu_custom_call.1} parent=1 // pred_fallthru
      _
    %p81 = scmp.eq.s32.totalorder 0, 0
    // Predicated region
    $region46: #{tpu_custom_call.1} parent=1 // pred_check
      %p82 = pneg %p81
    $region47: #{tpu_custom_call.1} parent=1 // pred_check_branch
      %84 = sbr.rel (%p82) target = $region49
    $region48: #{tpu_custom_call.1} parent=1 // pred_region
      %v85 = vld [vmem:[#allocation3] sm:$0xf]
      %v86 = vld [vmem:[#allocation6] sm:$0xf]
      %v87 = vld [vmem:[#allocation6 + $0x4] sm:$0xf]
      %v88 = vld [vmem:[#allocation6 + $0x8] sm:$0xf]
      %v89 = vld [vmem:[#allocation6 + $0xc] sm:$0xf]
      %v90 = vld [vmem:[#allocation6 + $0x10] sm:$0xf]
      %v91 = vld [vmem:[#allocation6 + $0x14] sm:$0xf]
      %v92 = vld [vmem:[#allocation6 + $0x18] sm:$0xf]
      %v93 = vld [vmem:[#allocation6 + $0x1c] sm:$0xf]
      %v94 = vld [vmem:[#allocation6 + $0x20] sm:$0xf]
      %v95 = vld [vmem:[#allocation6 + $0x24] sm:$0xf]
      %v96 = vld [vmem:[#allocation6 + $0x28] sm:$0xf]
      %v97 = vld [vmem:[#allocation6 + $0x2c] sm:$0xf]
      %v98 = vld [vmem:[#allocation6 + $0x30] sm:$0xf]
      %v99 = vld [vmem:[#allocation6 + $0x34] sm:$0xf]
      %v100 = vld [vmem:[#allocation6 + $0x38] sm:$0xf]
      %v101 = vld [vmem:[#allocation6 + $0x3c] sm:$0xf]
      %v102 = vld [vmem:[%s2] sm:$0x1]
      %v104 = vlaneseq
      %v105 = vshrl.u32 %v104, 7
      %v106 = vsub.s32 0, %v105
      %v107 = vrot.slane %v102, %v106
      %v125 = vunpack.c.l.b16 %v86
      %v126 = vunpack.c.l.b16 %v87
      %v127 = vunpack.c.l.b16 %v88
      %v128 = vunpack.c.l.b16 %v89
      %v129 = vunpack.c.l.b16 %v90
      %v130 = vunpack.c.l.b16 %v91
      %v131 = vunpack.c.l.b16 %v92
      %v132 = vunpack.c.l.b16 %v93
      %v133 = vunpack.c.l.b16 %v94
      %v134 = vunpack.c.l.b16 %v95
      %v135 = vunpack.c.l.b16 %v96
      %v136 = vunpack.c.l.b16 %v97
      %v137 = vunpack.c.l.b16 %v98
      %v138 = vunpack.c.l.b16 %v99
      %v139 = vunpack.c.l.b16 %v100
      %v140 = vunpack.c.l.b16 %v101
      %v141 = vpack.c.b16 %v126, %v125
      %v142 = vpack.c.b16 %v128, %v127
      %v143 = vpack.c.b16 %v130, %v129
      %v144 = vpack.c.b16 %v132, %v131
      %v145 = vpack.c.b16 %v134, %v133
      %v146 = vpack.c.b16 %v136, %v135
      %v147 = vpack.c.b16 %v138, %v137
      %v148 = vpack.c.b16 %v140, %v139
      %157 = vmatprep.subr.bf16.mxu0 0
      %158 = vmatpush1.bf16.msra.mxu0 %v141
      %159 = vmatprep.subr.bf16.mxu0 0
      %160 = vmatpush1.bf16.msra.mxu0 %v142
      %161 = vmatprep.subr.bf16.mxu0 0
      %162 = vmatpush1.bf16.msra.mxu0 %v143
      %163 = vmatprep.subr.bf16.mxu0 0
      %164 = vmatpush1.bf16.msra.mxu0 %v144
      %165 = vmatprep.subr.bf16.mxu0 0
      %166 = vmatpush1.bf16.msra.mxu0 %v145
      %167 = vmatprep.subr.bf16.mxu0 0
      %168 = vmatpush1.bf16.msra.mxu0 %v146
      %169 = vmatprep.subr.bf16.mxu0 0
      %170 = vmatpush1.bf16.msra.mxu0 %v147
      %171 = vmatprep.subr.bf16.mxu0 0
      %172 = vmatpush1.bf16.msra.mxu0 %v148
      %173 = vmatprep.subr.bf16.mxu0 0
      %174 = vmatpush1.bf16.msra.mxu0 0
      %175 = vmatprep.subr.bf16.mxu0 0
      %176 = vmatpush1.bf16.msra.mxu0 0
      %177 = vmatprep.subr.bf16.mxu0 0
      %178 = vmatpush1.bf16.msra.mxu0 0
      %179 = vmatprep.subr.bf16.mxu0 0
      %180 = vmatpush1.bf16.msra.mxu0 0
      %181 = vmatprep.subr.bf16.mxu0 0
      %182 = vmatpush1.bf16.msra.mxu0 0
      %183 = vmatprep.subr.bf16.mxu0 0
      %184 = vmatpush1.bf16.msra.mxu0 0
      %185 = vmatprep.subr.bf16.mxu0 0
      %186 = vmatpush1.bf16.msra.mxu0 0
      %187 = vmatprep.subr.bf16.mxu0 0
      %188 = vmatpush1.bf16.msra.mxu0 0
      %189 = vmatprep.mubr.bf16.mxu0 0
      %190 = vmatmul.mubr.bf16.gmra.mrb[0].mxu0 %v85
      %v191 = vpop.f32.mrb[0].mxu0
      %v192 = vadd.f32 %v107, %v191
      %v193 = vpop.f32.mrb[0].mxu0
      %v194 = vpop.f32.mrb[0].mxu0
      %v195 = vpop.f32.mrb[0].mxu0
      %196 = vdwg.mxu0
      %v197 = vmax.f32 %v192, 0.0
      %v198 = vpack.c.bf16 %v197, %v197
      %v199 = vld [vmem:[#allocation8] sm:$0xf]
      %v200 = vld [vmem:[#allocation8 + $0x4] sm:$0xf]
      %v201 = vld [vmem:[#allocation8 + $0x8] sm:$0xf]
      %v202 = vld [vmem:[#allocation8 + $0xc] sm:$0xf]
      %v203 = vld [vmem:[#allocation8 + $0x10] sm:$0xf]
      %v204 = vld [vmem:[#allocation8 + $0x14] sm:$0xf]
      %v205 = vld [vmem:[#allocation8 + $0x18] sm:$0xf]
      %v206 = vld [vmem:[#allocation8 + $0x1c] sm:$0xf]
      %v207 = vld [vmem:[#allocation8 + $0x20] sm:$0xf]
      %v208 = vld [vmem:[#allocation8 + $0x24] sm:$0xf]
      %v209 = vld [vmem:[#allocation8 + $0x28] sm:$0xf]
      %v210 = vld [vmem:[#allocation8 + $0x2c] sm:$0xf]
      %v211 = vld [vmem:[#allocation8 + $0x30] sm:$0xf]
      %v212 = vld [vmem:[#allocation8 + $0x34] sm:$0xf]
      %v213 = vld [vmem:[#allocation8 + $0x38] sm:$0xf]
      %v214 = vld [vmem:[#allocation8 + $0x3c] sm:$0xf]
      %v215 = vld [vmem:[%s4] sm:$0x1]
      %v217 = vlaneseq
      %v218 = vshrl.u32 %v217, 7
      %v219 = vsub.s32 0, %v218
      %v220 = vrot.slane %v215, %v219
      %v238 = vunpack.c.l.b16 %v199
      %v239 = vunpack.c.l.b16 %v200
      %v240 = vunpack.c.l.b16 %v201
      %v241 = vunpack.c.l.b16 %v202
      %v242 = vunpack.c.l.b16 %v203
      %v243 = vunpack.c.l.b16 %v204
      %v244 = vunpack.c.l.b16 %v205
      %v245 = vunpack.c.l.b16 %v206
      %v246 = vunpack.c.l.b16 %v207
      %v247 = vunpack.c.l.b16 %v208
      %v248 = vunpack.c.l.b16 %v209
      %v249 = vunpack.c.l.b16 %v210
      %v250 = vunpack.c.l.b16 %v211
      %v251 = vunpack.c.l.b16 %v212
      %v252 = vunpack.c.l.b16 %v213
      %v253 = vunpack.c.l.b16 %v214
      %v254 = vpack.c.b16 %v239, %v238
      %v255 = vpack.c.b16 %v241, %v240
      %v256 = vpack.c.b16 %v243, %v242
      %v257 = vpack.c.b16 %v245, %v244
      %v258 = vpack.c.b16 %v247, %v246
      %v259 = vpack.c.b16 %v249, %v248
      %v260 = vpack.c.b16 %v251, %v250
      %v261 = vpack.c.b16 %v253, %v252
      %270 = vmatprep.subr.bf16.mxu0 0
      %271 = vmatpush1.bf16.msra.mxu0 %v254
      %272 = vmatprep.subr.bf16.mxu0 0
      %273 = vmatpush1.bf16.msra.mxu0 %v255
      %274 = vmatprep.subr.bf16.mxu0 0
      %275 = vmatpush1.bf16.msra.mxu0 %v256
      %276 = vmatprep.subr.bf16.mxu0 0
      %277 = vmatpush1.bf16.msra.mxu0 %v257
      %278 = vmatprep.subr.bf16.mxu0 0
      %279 = vmatpush1.bf16.msra.mxu0 %v258
      %280 = vmatprep.subr.bf16.mxu0 0
      %281 = vmatpush1.bf16.msra.mxu0 %v259
      %282 = vmatprep.subr.bf16.mxu0 0
      %283 = vmatpush1.bf16.msra.mxu0 %v260
      %284 = vmatprep.subr.bf16.mxu0 0
      %285 = vmatpush1.bf16.msra.mxu0 %v261
      %286 = vmatprep.subr.bf16.mxu0 0
      %287 = vmatpush1.bf16.msra.mxu0 0
      %288 = vmatprep.subr.bf16.mxu0 0
      %289 = vmatpush1.bf16.msra.mxu0 0
      %290 = vmatprep.subr.bf16.mxu0 0
      %291 = vmatpush1.bf16.msra.mxu0 0
      %292 = vmatprep.subr.bf16.mxu0 0
      %293 = vmatpush1.bf16.msra.mxu0 0
      %294 = vmatprep.subr.bf16.mxu0 0
      %295 = vmatpush1.bf16.msra.mxu0 0
      %296 = vmatprep.subr.bf16.mxu0 0
      %297 = vmatpush1.bf16.msra.mxu0 0
      %298 = vmatprep.subr.bf16.mxu0 0
      %299 = vmatpush1.bf16.msra.mxu0 0
      %300 = vmatprep.subr.bf16.mxu0 0
      %301 = vmatpush1.bf16.msra.mxu0 0
      %302 = vmatprep.mubr.bf16.mxu0 0
      %303 = vmatmul.mubr.bf16.gmra.mrb[0].mxu0 %v198
      %v304 = vpop.f32.mrb[0].mxu0
      %v305 = vadd.f32 %v220, %v304
      %v306 = vpop.f32.mrb[0].mxu0
      %v307 = vpop.f32.mrb[0].mxu0
      %v308 = vpop.f32.mrb[0].mxu0
      %309 = vdwg.mxu0
      %v310 = vmax.f32 %v305, 0.0
      %v311 = vpack.c.bf16 %v310, %v310
      %312 = vst [vmem:[#allocation2] sm:$0xf] %v311
    $region49: #{tpu_custom_call.1} parent=1 // pred_fallthru
      _
    %v313 = vld [vmem:[#allocation2] sm:$0xf]
    %v314 = vld [vmem:[#allocation9] sm:$0xf]
    %v315 = vld [vmem:[#allocation9 + $0x4] sm:$0xf]
    %v316 = vld [vmem:[#allocation9 + $0x8] sm:$0xf]
    %v317 = vld [vmem:[#allocation9 + $0xc] sm:$0xf]
    %v318 = vld [vmem:[#allocation9 + $0x10] sm:$0xf]
    %v319 = vld [vmem:[#allocation9 + $0x14] sm:$0xf]
    %v320 = vld [vmem:[#allocation9 + $0x18] sm:$0xf]
    %v321 = vld [vmem:[#allocation9 + $0x1c] sm:$0xf]
    %v322 = vld [vmem:[#allocation9 + $0x20] sm:$0xf]
    %v323 = vld [vmem:[#allocation9 + $0x24] sm:$0xf]
    %v324 = vld [vmem:[#allocation9 + $0x28] sm:$0xf]
    %v325 = vld [vmem:[#allocation9 + $0x2c] sm:$0xf]
    %v326 = vld [vmem:[#allocation9 + $0x30] sm:$0xf]
    %v327 = vld [vmem:[#allocation9 + $0x34] sm:$0xf]
    %v328 = vld [vmem:[#allocation9 + $0x38] sm:$0xf]
    %v329 = vld [vmem:[#allocation9 + $0x3c] sm:$0xf]
    %v330 = vld [vmem:[%s6] sm:$0x1]
    %v332 = vlaneseq
    %v333 = vshrl.u32 %v332, 7
    %v334 = vsub.s32 0, %v333
    %v335 = vrot.slane %v330, %v334
    %v353 = vunpack.c.l.b16 %v314
    %v354 = vunpack.c.l.b16 %v315
    %v355 = vunpack.c.l.b16 %v316
    %v356 = vunpack.c.l.b16 %v317
    %v357 = vunpack.c.l.b16 %v318
    %v358 = vunpack.c.l.b16 %v319
    %v359 = vunpack.c.l.b16 %v320
    %v360 = vunpack.c.l.b16 %v321
    %v361 = vunpack.c.l.b16 %v322
    %v362 = vunpack.c.l.b16 %v323
    %v363 = vunpack.c.l.b16 %v324
    %v364 = vunpack.c.l.b16 %v325
    %v365 = vunpack.c.l.b16 %v326
    %v366 = vunpack.c.l.b16 %v327
    %v367 = vunpack.c.l.b16 %v328
    %v368 = vunpack.c.l.b16 %v329
    %v369 = vpack.c.b16 %v354, %v353
    %v370 = vpack.c.b16 %v356, %v355
    %v371 = vpack.c.b16 %v358, %v357
    %v372 = vpack.c.b16 %v360, %v359
    %v373 = vpack.c.b16 %v362, %v361
    %v374 = vpack.c.b16 %v364, %v363
    %v375 = vpack.c.b16 %v366, %v365
    %v376 = vpack.c.b16 %v368, %v367
    %385 = vmatprep.subr.bf16.mxu0 0
    %386 = vmatpush1.bf16.msra.mxu0 %v369
    %387 = vmatprep.subr.bf16.mxu0 0
    %388 = vmatpush1.bf16.msra.mxu0 %v370
    %389 = vmatprep.subr.bf16.mxu0 0
    %390 = vmatpush1.bf16.msra.mxu0 %v371
    %391 = vmatprep.subr.bf16.mxu0 0
    %392 = vmatpush1.bf16.msra.mxu0 %v372
    %393 = vmatprep.subr.bf16.mxu0 0
    %394 = vmatpush1.bf16.msra.mxu0 %v373
    %395 = vmatprep.subr.bf16.mxu0 0
    %396 = vmatpush1.bf16.msra.mxu0 %v374
    %397 = vmatprep.subr.bf16.mxu0 0
    %398 = vmatpush1.bf16.msra.mxu0 %v375
    %399 = vmatprep.subr.bf16.mxu0 0
    %400 = vmatpush1.bf16.msra.mxu0 %v376
    %401 = vmatprep.subr.bf16.mxu0 0
    %402 = vmatpush1.bf16.msra.mxu0 0
    %403 = vmatprep.subr.bf16.mxu0 0
    %404 = vmatpush1.bf16.msra.mxu0 0
    %405 = vmatprep.subr.bf16.mxu0 0
    %406 = vmatpush1.bf16.msra.mxu0 0
    %407 = vmatprep.subr.bf16.mxu0 0
    %408 = vmatpush1.bf16.msra.mxu0 0
    %409 = vmatprep.subr.bf16.mxu0 0
    %410 = vmatpush1.bf16.msra.mxu0 0
    %411 = vmatprep.subr.bf16.mxu0 0
    %412 = vmatpush1.bf16.msra.mxu0 0
    %413 = vmatprep.subr.bf16.mxu0 0
    %414 = vmatpush1.bf16.msra.mxu0 0
    %415 = vmatprep.subr.bf16.mxu0 0
    %416 = vmatpush1.bf16.msra.mxu0 0
    %417 = vmatprep.mubr.bf16.mxu0 0
    %418 = vmatmul.mubr.bf16.gmra.mrb[0].mxu0 %v313
    %v419 = vpop.f32.mrb[0].mxu0
    %v420 = vadd.f32 %v335, %v419
    %v421 = vpop.f32.mrb[0].mxu0
    %v422 = vpop.f32.mrb[0].mxu0
    %v423 = vpop.f32.mrb[0].mxu0
    %424 = vdwg.mxu0
    %v425 = vxor.u32 %v420, 2147483648
    %v426 = vmul.f32 %v425, 1.442695
    %v427 = vpow.pop %v426
    %v428 = vadd.f32 %v427, 1.0
    %v429 = vrcp.pop %v428
    %v430 = vmul.f32 1.0, %v429
    %431 = vst [vmem:[#allocation11] sm:$0xff] %v430
    // Predicated region
    $region50: #{tpu_custom_call.1} parent=1 // pred_check
      _
    $region51: #{tpu_custom_call.1} parent=1 // pred_check_branch
      %433 = sbr.rel (0) target = $region53
    $region52: #{tpu_custom_call.1} parent=1 // pred_region
      %s435 = ssub.s32 128, 128
      %436 = vsyncadd [#allocation5], %s435
      %s438 = sshll.u32 [#allocation11], 4
      %s439 = int_to_ptr.vmem [resolvable:$true] %s438
      %441 = dma.vmem_to_hbm [thread:$0]  %s439, 128, %s7, [#allocation5]
    $region53: #{tpu_custom_call.1} parent=1 // pred_fallthru
      _
    // Predicated region
    $region54: #{tpu_custom_call.1} parent=1 // pred_check
      _
    $region55: #{tpu_custom_call.1} parent=1 // pred_check_branch
      %443 = sbr.rel (0) target = $region57
    $region56: #{tpu_custom_call.1} parent=1 // pred_region
      %444 = dma.done [#allocation5], 128
    $region57: #{tpu_custom_call.1} parent=1 // pred_fallthru
      _
    %445 = vsyncpa [#allocation4], 1
    %446 = vsyncpa [#allocation7], 1
    %447 = vsyncpa [#allocation10], 1
    %448 = vsyncpa [#allocation5], 1

</llo_original>
